<compile_context>
chip_gen: v7x
topology: tpu7x:2x2x1
jax: 0.10.0
libtpu: 0.0.40
codegen_flags: <defaults>
</compile_context>

<pallas_src>
import jax
import jax.numpy as jnp
from jax import lax
from jax.experimental import pallas as pl
from jax.experimental.pallas import tpu as pltpu

NEG_SLOPE = 0.01   # nn.LeakyReLU default
SLAB = 128         # lane-dense output slab width


def _leaky_relu(x):
    return jnp.where(x >= 0, x, NEG_SLOPE * x)


def _round_up(x, m):
    return -(-x // m) * m


# ---------------------------------------------------------------------------
# Kernel 1: VAE encoder + reparameterize + topic softmax + KL.
# Grid = (cell tiles, feature contraction tiles).  h is accumulated over the
# feature (K) axis in a VMEM scratch; the encoder head runs once at the last
# K tile.  Output slab (tb, 128): lanes [0:T] = theta, lane T = kl.
# ---------------------------------------------------------------------------
def _enc_kernel(xn_ref, w1_ref, b1_ref, wh_ref, bh_ref, eps_ref, out_ref, h_acc):
    f = pl.program_id(1)
    nf = pl.num_programs(1)

    @pl.when(f == 0)
    def _():
        h_acc[...] = jnp.zeros_like(h_acc)

    # contraction tile of x @ W1 (MXU, f32 accumulation)
    h_acc[...] += jnp.dot(xn_ref[...], w1_ref[...],
                          preferred_element_type=jnp.float32)

    @pl.when(f == nf - 1)
    def _():
        T = wh_ref.shape[1] // 2
        h = _leaky_relu(h_acc[...] + b1_ref[...])                         # (tb, E)
        # fused (E, 2T) head: one matmul for [mu | logvar]
        head = jnp.dot(h, wh_ref[...],
                       preferred_element_type=jnp.float32) + bh_ref[...]  # (tb, 2T)
        mu = head[:, :T]
        logvar = head[:, T:]
        kl = -0.5 * jnp.sum(1.0 + logvar - mu * mu - jnp.exp(logvar),
                            axis=-1, keepdims=True)                       # (tb, 1)
        # reparameterize + softmax over topics
        # TODO(synk): eps could be generated in-kernel with pltpu.prng_*; kept as an
        # input so the pure-JAX reference sees identical noise.
        z = eps_ref[...] * jnp.exp(0.5 * logvar) + mu
        z = z - jnp.max(z, axis=-1, keepdims=True)
        ez = jnp.exp(z)
        theta = ez / jnp.sum(ez, axis=-1, keepdims=True)                  # (tb, T)

        out_ref[...] = jnp.zeros_like(out_ref)
        out_ref[:, :T] = theta
        out_ref[:, T:T + 1] = kl


# ---------------------------------------------------------------------------
# Kernel 2: ETM decoder + per-cell reconstruction loss.
# Grid = (cell tiles, output-feature tiles).  Per-cell recon accumulated over
# feature tiles in VMEM; written as a lane-dense (tb, 128) slab at the last tile.
# ---------------------------------------------------------------------------
def _dec_kernel(enc_ref, beta_ref, xr_ref, out_ref, acc):
    f = pl.program_id(1)
    nf = pl.num_programs(1)

    @pl.when(f == 0)
    def _():
        acc[...] = jnp.zeros_like(acc)

    T = beta_ref.shape[1]
    theta = enc_ref[:, :T]                                                # (tb, T)
    # theta @ beta^T without materializing the transpose: contract the T axes.
    res = lax.dot_general(theta, beta_ref[...],
                          dimension_numbers=(((1,), (1,)), ((), ())),
                          preferred_element_type=jnp.float32)             # (tb, tf)
    pred = jnp.log(res + 1e-6)
    acc[...] += -jnp.sum(pred * xr_ref[...], axis=-1, keepdims=True)      # (tb, 1)

    @pl.when(f == nf - 1)
    def _():
        out_ref[...] = jnp.broadcast_to(acc[...], out_ref.shape)


# ---------------------------------------------------------------------------
# Per-modality wrapper
# ---------------------------------------------------------------------------
def _pad2d(x, rows, cols):
    pr, pc = rows - x.shape[0], cols - x.shape[1]
    if pr == 0 and pc == 0:
        return x
    return jnp.pad(x, ((0, pr), (0, pc)))


def etm_modality_forward(x_norm, x_raw, p, eps, *, tb=None, tf=None):
    """One modality (RNA or ATAC): returns (recon_per_cell (B,), kl_per_cell (B,))."""
    B, F = x_norm.shape
    E = p["w1"].shape[1]
    T = p["alpha_w"].shape[1]
    assert T + 1 <= SLAB, "topic count must fit in the 128-lane output slab"

    # Tile sizes: as large as sensible (amortize grid-step overhead, roofline DMAs),
    # shrunk for small inputs so padding stays minimal.  (8,128)-aligned.
    if tb is None:
        tb = min(128, _round_up(B, 8))
    if tf is None:
        tf = min(512, _round_up(F, 128))

    # Hoisted, batch-independent LDEC term: beta^T = softmax_F(LeakyReLU(rho @ Wa)).
    # Computed once per forward in plain JAX (tiny vs. the per-cell work).
    # TODO(synk): nn.Dropout(p=0.1) inside LDEC.alphas omitted (eval/inference semantics).
    alphas = _leaky_relu(p["rho"] @ p["alpha_w"])
    beta_t = jax.nn.softmax(alphas, axis=0)                               # (F, T)

    Bp = _round_up(B, tb)
    Fp = _round_up(F, tf)
    nb, nf = Bp // tb, Fp // tf

    # zero padding is exact: padded features contribute 0 to h and to recon,
    # padded cells are sliced off below.
    xn = _pad2d(x_norm, Bp, Fp)
    xr = _pad2d(x_raw, Bp, Fp)
    w1 = _pad2d(p["w1"], Fp, E)
    bt = _pad2d(beta_t, Fp, T)
    ep = _pad2d(eps, Bp, T)

    enc = pl.pallas_call(
        _enc_kernel,
        out_shape=jax.ShapeDtypeStruct((Bp, SLAB), jnp.float32),
        grid_spec=pltpu.PrefetchScalarGridSpec(
            num_scalar_prefetch=0,
            grid=(nb, nf),
            in_specs=[
                pl.BlockSpec((tb, tf), lambda i, f: (i, f)),      # x_norm tile
                pl.BlockSpec((tf, E), lambda i, f: (f, 0)),       # W1 contraction tile
                pl.BlockSpec((1, E), lambda i, f: (0, 0)),        # b1 (resident)
                pl.BlockSpec((E, 2 * T), lambda i, f: (0, 0)),    # fused [Wmu|Wls] (resident)
                pl.BlockSpec((1, 2 * T), lambda i, f: (0, 0)),    # fused [bmu|bls] (resident)
                pl.BlockSpec((tb, T), lambda i, f: (i, 0)),       # eps (per cell tile)
            ],
            out_specs=pl.BlockSpec((tb, SLAB), lambda i, f: (i, 0)),
            scratch_shapes=[pltpu.VMEM((tb, E), jnp.float32)],
        ),
        compiler_params=pltpu.CompilerParams(
            dimension_semantics=("parallel", "arbitrary")),
    )(xn, w1, p["b1"], p["wh"], p["bh"], ep)

    rec = pl.pallas_call(
        _dec_kernel,
        out_shape=jax.ShapeDtypeStruct((Bp, SLAB), jnp.float32),
        grid_spec=pltpu.PrefetchScalarGridSpec(
            num_scalar_prefetch=0,
            grid=(nb, nf),
            in_specs=[
                pl.BlockSpec((tb, SLAB), lambda i, f: (i, 0)),    # theta/kl slab (resident per i)
                pl.BlockSpec((tf, T), lambda i, f: (f, 0)),       # beta^T feature tile
                pl.BlockSpec((tb, tf), lambda i, f: (i, f)),      # x_raw tile
            ],
            out_specs=pl.BlockSpec((tb, SLAB), lambda i, f: (i, 0)),
            scratch_shapes=[pltpu.VMEM((tb, 1), jnp.float32)],
        ),
        compiler_params=pltpu.CompilerParams(
            dimension_semantics=("parallel", "arbitrary")),
    )(enc, bt, xr)

    recon = rec[:B, 0]
    kl = enc[:B, T]
    return recon, kl


# ---------------------------------------------------------------------------
# Parameter init (deterministic; shapes implied by __init__)
# ---------------------------------------------------------------------------
def init_modality_params(key, num_feat, emb_size, num_topics):
    k = jax.random.split(key, 6)
    s_in = 1.0 / jnp.sqrt(jnp.float32(num_feat))
    s_e = 1.0 / jnp.sqrt(jnp.float32(emb_size))
    return {
        # VAE encoder
        "w1": jax.random.uniform(k[0], (num_feat, emb_size), jnp.float32, -s_in, s_in),
        "b1": jnp.zeros((1, emb_size), jnp.float32),
        # fused head: [Wmu | Wlogsigma], [bmu | blogsigma]
        "wh": jax.random.uniform(k[1], (emb_size, 2 * num_topics), jnp.float32, -s_e, s_e),
        "bh": jnp.zeros((1, 2 * num_topics), jnp.float32),
        # LDEC decoder
        "rho": jax.random.normal(k[3], (num_feat, emb_size), jnp.float32) * 0.1,
        "alpha_w": jax.random.uniform(k[4], (emb_size, num_topics), jnp.float32, -s_e, s_e),
    }


# ---------------------------------------------------------------------------
# ScModel.forward (use_gnn=False / use_xtrimo=False branch)
# ---------------------------------------------------------------------------
def sc_model_forward(batch, params_rna, params_atac, noise_key):
    RNA, RNA_n, ATAC, ATAC_n = batch
    T = params_rna["alpha_w"].shape[1]
    k1, k2 = jax.random.split(noise_key)
    eps1 = jax.random.normal(k1, (RNA.shape[0], T), jnp.float32)
    eps2 = jax.random.normal(k2, (ATAC.shape[0], T), jnp.float32)

    recon1, kl1 = etm_modality_forward(RNA_n, RNA, params_rna, eps1)
    recon2, kl2 = etm_modality_forward(ATAC_n, ATAC, params_atac, eps2)

    recon_loss = jnp.mean(recon1 + recon2)
    kl_loss = jnp.mean(kl1 + kl2)
    edge_recon_loss = jnp.float32(0.0)   # use_gnn=False / edge_index=None
    emb = None                            # GNN branch disabled
    return recon_loss, kl_loss, edge_recon_loss, emb


# ---------------------------------------------------------------------------
# Pure-JAX reference for correctness checking
# ---------------------------------------------------------------------------
def _ref_modality(x_norm, x_raw, p, eps):
    T = p["alpha_w"].shape[1]
    h = _leaky_relu(x_norm @ p["w1"] + p["b1"])
    head = h @ p["wh"] + p["bh"]
    mu, logvar = head[:, :T], head[:, T:]
    kl = -0.5 * jnp.sum(1.0 + logvar - mu ** 2 - jnp.exp(logvar), axis=-1)
    z = eps * jnp.exp(0.5 * logvar) + mu
    theta = jax.nn.softmax(z, axis=-1)
    alphas = _leaky_relu(p["rho"] @ p["alpha_w"])
    beta_t = jax.nn.softmax(alphas, axis=0)
    pred = jnp.log(theta @ beta_t.T + 1e-6)
    return -jnp.sum(pred * x_raw, axis=-1), kl


if __name__ == "__main__":
    B, G, P, E, T = 16, 256, 384, 32, 16   # cells, genes, peaks, emb_size, topics

    key = jax.random.PRNGKey(0)
    k_data, k_prna, k_patac, k_noise = jax.random.split(key, 4)
    kd = jax.random.split(k_data, 2)

    # synthetic raw counts + row-normalized counts
    RNA = jnp.abs(jax.random.normal(kd[0], (B, G), jnp.float32)) * 3.0
    ATAC = (jax.random.uniform(kd[1], (B, P), jnp.float32) > 0.7).astype(jnp.float32)
    RNA_n = RNA / (jnp.sum(RNA, axis=-1, keepdims=True) + 1e-8)
    ATAC_n = ATAC / (jnp.sum(ATAC, axis=-1, keepdims=True) + 1e-8)

    params_rna = init_modality_params(k_prna, G, E, T)
    params_atac = init_modality_params(k_patac, P, E, T)

    batch = (RNA, RNA_n, ATAC, ATAC_n)
    recon_loss, kl_loss, edge_recon_loss, emb = sc_model_forward(
        batch, params_rna, params_atac, k_noise)
    jax.block_until_ready((recon_loss, kl_loss, edge_recon_loss))

    # reference check (same eps draws as sc_model_forward)
    kn1, kn2 = jax.random.split(k_noise)
    eps1 = jax.random.normal(kn1, (B, T), jnp.float32)
    eps2 = jax.random.normal(kn2, (B, T), jnp.float32)
    r1, c1 = _ref_modality(RNA_n, RNA, params_rna, eps1)
    r2, c2 = _ref_modality(ATAC_n, ATAC, params_atac, eps2)
    ref_recon = jnp.mean(r1 + r2)
    ref_kl = jnp.mean(c1 + c2)
    assert jnp.allclose(recon_loss, ref_recon, rtol=1e-4, atol=1e-3), (recon_loss, ref_recon)
    assert jnp.allclose(kl_loss, ref_kl, rtol=1e-4, atol=1e-3), (kl_loss, ref_kl)

    print("KERNEL_OK")
</pallas_src>

<mosaic_0001>
module attributes {stable_mosaic.version = 11 : i64} {
  func.func @_enc_kernel(%arg0: i32, %arg1: i32, %arg2: memref<16x256xf32, #tpu.memory_space<vmem>>, %arg3: memref<256x32xf32, #tpu.memory_space<vmem>>, %arg4: memref<1x32xf32, #tpu.memory_space<vmem>>, %arg5: memref<32x32xf32, #tpu.memory_space<vmem>>, %arg6: memref<1x32xf32, #tpu.memory_space<vmem>>, %arg7: memref<16x16xf32, #tpu.memory_space<vmem>>, %arg8: memref<16x128xf32, #tpu.memory_space<vmem>>, %arg9: memref<16x32xf32, #tpu.memory_space<vmem>>) attributes {dimension_semantics = [#tpu.dimension_semantics<parallel>, #tpu.dimension_semantics<arbitrary>], iteration_bounds = array<i64: 1, 1>, scalar_prefetch = 0 : i64, scratch_operands = 1 : i64, tpu.core_type = #tpu.core_type<tc>, window_params = [{transform_indices = @transform_0, window_bounds = array<i64: 16, 256>}, {transform_indices = @transform_1, window_bounds = array<i64: 256, 32>}, {pipeline_mode = #tpu.pipeline_mode<synchronous>, transform_indices = @transform_2, window_bounds = array<i64: 1, 32>}, {pipeline_mode = #tpu.pipeline_mode<synchronous>, transform_indices = @transform_3, window_bounds = array<i64: 32, 32>}, {pipeline_mode = #tpu.pipeline_mode<synchronous>, transform_indices = @transform_4, window_bounds = array<i64: 1, 32>}, {transform_indices = @transform_5, window_bounds = array<i64: 16, 16>}, {transform_indices = @transform_6, window_bounds = array<i64: 16, 128>}]} {
    %c0_i32 = arith.constant 0 : i32
    %0 = arith.cmpi eq, %arg1, %c0_i32 : i32
    %1 = arith.extui %0 : i1 to i32
    %c0_i32_0 = arith.constant 0 : i32
    %2 = arith.cmpi ne, %1, %c0_i32_0 : i32
    scf.if %2 {
      %cst_10 = arith.constant 0.000000e+00 : f32
      %12 = vector.broadcast %cst_10 : f32 to vector<16x32xf32>
      %c0_11 = arith.constant 0 : index
      %c0_12 = arith.constant 0 : index
      %13 = vector.load %arg9[%c0_11, %c0_12] : memref<16x32xf32, #tpu.memory_space<vmem>>, vector<16x32xf32>
      tpu.vector_store %arg9[%c0_11, %c0_12], %12 {strides = array<i32>} : memref<16x32xf32, #tpu.memory_space<vmem>>, vector<16x32xf32>,
    } else {
    }
    %c0 = arith.constant 0 : index
    %c0_1 = arith.constant 0 : index
    %3 = vector.load %arg9[%c0, %c0_1] : memref<16x32xf32, #tpu.memory_space<vmem>>, vector<16x32xf32>
    %c0_2 = arith.constant 0 : index
    %c0_3 = arith.constant 0 : index
    %4 = vector.load %arg2[%c0_2, %c0_3] : memref<16x256xf32, #tpu.memory_space<vmem>>, vector<16x256xf32>
    %c0_4 = arith.constant 0 : index
    %c0_5 = arith.constant 0 : index
    %5 = vector.load %arg3[%c0_4, %c0_5] : memref<256x32xf32, #tpu.memory_space<vmem>>, vector<256x32xf32>
    %cst = arith.constant dense<0.000000e+00> : vector<16x32xf32>
    %6 = tpu.matmul %4, %5, %cst {dimension_numbers = #tpu.dot_dimension_numbers<[1], [0], [0], [1], [0, 0, 1, 1], [], []>} : vector<16x256xf32>, vector<256x32xf32>, vector<16x32xf32> -> vector<16x32xf32>
    %7 = arith.addf %3, %6 : vector<16x32xf32>
    %c0_6 = arith.constant 0 : index
    %c0_7 = arith.constant 0 : index
    %8 = vector.load %arg9[%c0_6, %c0_7] : memref<16x32xf32, #tpu.memory_space<vmem>>, vector<16x32xf32>
    tpu.vector_store %arg9[%c0_6, %c0_7], %7 {strides = array<i32>} : memref<16x32xf32, #tpu.memory_space<vmem>>, vector<16x32xf32>,
    %c0_i32_8 = arith.constant 0 : i32
    %9 = arith.cmpi eq, %arg1, %c0_i32_8 : i32
    %10 = arith.extui %9 : i1 to i32
    %c0_i32_9 = arith.constant 0 : i32
    %11 = arith.cmpi ne, %10, %c0_i32_9 : i32
    scf.if %11 {
      %c0_10 = arith.constant 0 : index
      %c0_11 = arith.constant 0 : index
      %12 = vector.load %arg9[%c0_10, %c0_11] : memref<16x32xf32, #tpu.memory_space<vmem>>, vector<16x32xf32>
      %c0_12 = arith.constant 0 : index
      %c0_13 = arith.constant 0 : index
      %13 = vector.load %arg4[%c0_12, %c0_13] : memref<1x32xf32, #tpu.memory_space<vmem>>, vector<1x32xf32>
      %14 = vector.broadcast %13 : vector<1x32xf32> to vector<16x32xf32>
      %15 = arith.addf %12, %14 : vector<16x32xf32>
      %cst_14 = arith.constant 0.000000e+00 : f32
      %16 = vector.broadcast %cst_14 : f32 to vector<16x32xf32>
      %17 = arith.cmpf oge, %15, %16 : vector<16x32xf32>
      %cst_15 = arith.constant 0.00999999977 : f32
      %18 = vector.broadcast %cst_15 : f32 to vector<16x32xf32>
      %19 = arith.mulf %18, %15 : vector<16x32xf32>
      %20 = arith.select %17, %15, %19 : vector<16x32xi1>, vector<16x32xf32>
      %c0_16 = arith.constant 0 : index
      %c0_17 = arith.constant 0 : index
      %21 = vector.load %arg5[%c0_16, %c0_17] : memref<32x32xf32, #tpu.memory_space<vmem>>, vector<32x32xf32>
      %cst_18 = arith.constant dense<0.000000e+00> : vector<16x32xf32>
      %22 = tpu.matmul %20, %21, %cst_18 {dimension_numbers = #tpu.dot_dimension_numbers<[1], [0], [0], [1], [0, 0, 1, 1], [], []>} : vector<16x32xf32>, vector<32x32xf32>, vector<16x32xf32> -> vector<16x32xf32>
      %c0_19 = arith.constant 0 : index
      %c0_20 = arith.constant 0 : index
      %23 = vector.load %arg6[%c0_19, %c0_20] : memref<1x32xf32, #tpu.memory_space<vmem>>, vector<1x32xf32>
      %24 = vector.broadcast %23 : vector<1x32xf32> to vector<16x32xf32>
      %25 = arith.addf %22, %24 : vector<16x32xf32>
      %26 = vector.extract_strided_slice %25 {offsets = [0, 0], sizes = [16, 16], strides = [1, 1]} : vector<16x32xf32> to vector<16x16xf32>
      %27 = vector.extract_strided_slice %25 {offsets = [0, 16], sizes = [16, 16], strides = [1, 1]} : vector<16x32xf32> to vector<16x16xf32>
      %cst_21 = arith.constant 1.000000e+00 : f32
      %28 = vector.broadcast %cst_21 : f32 to vector<16x16xf32>
      %29 = arith.addf %28, %27 : vector<16x16xf32>
      %30 = arith.mulf %26, %26 : vector<16x16xf32>
      %31 = arith.subf %29, %30 : vector<16x16xf32>
      %32 = math.exp %27 : vector<16x16xf32>
      %33 = arith.subf %31, %32 : vector<16x16xf32>
      %cst_22 = arith.constant dense<0.000000e+00> : vector<16xf32>
      %34 = vector.multi_reduction <add>, %33, %cst_22 [1] : vector<16x16xf32> to vector<16xf32>
      %35 = vector.shape_cast %34 : vector<16xf32> to vector<16x1xf32>
      %cst_23 = arith.constant -5.000000e-01 : f32
      %36 = vector.broadcast %cst_23 : f32 to vector<16x1xf32>
      %37 = arith.mulf %36, %35 : vector<16x1xf32>
      %c0_24 = arith.constant 0 : index
      %c0_25 = arith.constant 0 : index
      %38 = vector.load %arg7[%c0_24, %c0_25] : memref<16x16xf32, #tpu.memory_space<vmem>>, vector<16x16xf32>
      %cst_26 = arith.constant 5.000000e-01 : f32
      %39 = vector.broadcast %cst_26 : f32 to vector<16x16xf32>
      %40 = arith.mulf %39, %27 : vector<16x16xf32>
      %41 = math.exp %40 : vector<16x16xf32>
      %42 = arith.mulf %38, %41 : vector<16x16xf32>
      %43 = arith.addf %42, %26 : vector<16x16xf32>
      %cst_27 = arith.constant dense<0xFF800000> : vector<16xf32>
      %44 = vector.multi_reduction <maximumf>, %43, %cst_27 [1] : vector<16x16xf32> to vector<16xf32>
      %45 = vector.shape_cast %44 : vector<16xf32> to vector<16x1xf32>
      %46 = vector.broadcast %45 : vector<16x1xf32> to vector<16x16xf32>
      %47 = arith.subf %43, %46 : vector<16x16xf32>
      %48 = math.exp %47 : vector<16x16xf32>
      %cst_28 = arith.constant dense<0.000000e+00> : vector<16xf32>
      %49 = vector.multi_reduction <add>, %48, %cst_28 [1] : vector<16x16xf32> to vector<16xf32>
      %50 = vector.shape_cast %49 : vector<16xf32> to vector<16x1xf32>
      %51 = vector.broadcast %50 : vector<16x1xf32> to vector<16x16xf32>
      %52 = arith.divf %48, %51 : vector<16x16xf32>
      %cst_29 = arith.constant 0.000000e+00 : f32
      %53 = vector.broadcast %cst_29 : f32 to vector<16x128xf32>
      %c0_30 = arith.constant 0 : index
      %c0_31 = arith.constant 0 : index
      %54 = vector.load %arg8[%c0_30, %c0_31] : memref<16x128xf32, #tpu.memory_space<vmem>>, vector<16x128xf32>
      tpu.vector_store %arg8[%c0_30, %c0_31], %53 {strides = array<i32>} : memref<16x128xf32, #tpu.memory_space<vmem>>, vector<16x128xf32>,
      %c0_32 = arith.constant 0 : index
      %c0_33 = arith.constant 0 : index
      %55 = vector.load %arg8[%c0_32, %c0_33] : memref<16x128xf32, #tpu.memory_space<vmem>>, vector<16x16xf32>
      tpu.vector_store %arg8[%c0_32, %c0_33], %52 {strides = array<i32>} : memref<16x128xf32, #tpu.memory_space<vmem>>, vector<16x16xf32>,
      %c0_34 = arith.constant 0 : index
      %c16 = arith.constant 16 : index
      %56 = vector.load %arg8[%c0_34, %c16] : memref<16x128xf32, #tpu.memory_space<vmem>>, vector<16x1xf32>
      tpu.vector_store %arg8[%c0_34, %c16], %37 {strides = array<i32>} : memref<16x128xf32, #tpu.memory_space<vmem>>, vector<16x1xf32>,
    } else {
    }
    return
  }
  func.func @transform_0(%arg0: i32, %arg1: i32) -> (i32, i32) {
    %c0_i32 = arith.constant 0 : i32
    return %arg0, %arg1 : i32, i32
  }
  func.func @transform_1(%arg0: i32, %arg1: i32) -> (i32, i32) {
    %c0_i32 = arith.constant 0 : i32
    %c0_i32_0 = arith.constant 0 : i32
    return %arg1, %c0_i32 : i32, i32
  }
  func.func @transform_2(%arg0: i32, %arg1: i32) -> (i32, i32) {
    %c0_i32 = arith.constant 0 : i32
    %c0_i32_0 = arith.constant 0 : i32
    %c0_i32_1 = arith.constant 0 : i32
    return %c0_i32, %c0_i32_0 : i32, i32
  }
  func.func @transform_3(%arg0: i32, %arg1: i32) -> (i32, i32) {
    %c0_i32 = arith.constant 0 : i32
    %c0_i32_0 = arith.constant 0 : i32
    %c0_i32_1 = arith.constant 0 : i32
    return %c0_i32, %c0_i32_0 : i32, i32
  }
  func.func @transform_4(%arg0: i32, %arg1: i32) -> (i32, i32) {
    %c0_i32 = arith.constant 0 : i32
    %c0_i32_0 = arith.constant 0 : i32
    %c0_i32_1 = arith.constant 0 : i32
    return %c0_i32, %c0_i32_0 : i32, i32
  }
  func.func @transform_5(%arg0: i32, %arg1: i32) -> (i32, i32) {
    %c0_i32 = arith.constant 0 : i32
    %c0_i32_0 = arith.constant 0 : i32
    return %arg0, %c0_i32 : i32, i32
  }
  func.func @transform_6(%arg0: i32, %arg1: i32) -> (i32, i32) {
    %c0_i32 = arith.constant 0 : i32
    %c0_i32_0 = arith.constant 0 : i32
    return %arg0, %c0_i32 : i32, i32
  }
}

</mosaic_0001>

<llo_original>
// kernel: tpu_custom_call.1
$region0: #{tpu_custom_call.1}
  #allocation0 [shape = 'u32[]', space=smem, size = 0x4, offset = 0x4, fixed_abs, tag = 'smem constant byte address 0x4 - core index']
  #allocation1 [shape = 'u32[144,128]{1,0:T(1,128)}', space=vmem, size = 0x12000, scoped, tag = 'internal scratch']
  #allocation2 [shape = 'f32[16,32]{1,0:T(8,128)}', space=vmem, size = 0x2000, scoped, tag = 'scratch operand']
  %s0 = inlined_call_operand.vmem [shape: f32[16,256], index: 0, kind: input, shape index: {}]
  %s1 = inlined_call_operand.vmem [shape: f32[256,32], index: 1, kind: input, shape index: {}]
  %s2 = inlined_call_operand.vmem [shape: f32[1,32], index: 2, kind: input, shape index: {}]
  %s3 = inlined_call_operand.vmem [shape: f32[32,32], index: 3, kind: input, shape index: {}]
  %s4 = inlined_call_operand.vmem [shape: f32[1,32], index: 4, kind: input, shape index: {}]
  %s5 = inlined_call_operand.vmem [shape: f32[16,16], index: 5, kind: input, shape index: {}]
  %s6 = inlined_call_operand.hbm [shape: f32[16,128], index: 6, kind: output, shape index: {}]
  %s7 = sld [smem:[#allocation0]]
  $region42: #{tpu_custom_call.1} parent=0
    _
  %s9 = ssub.s32 1, %s7
  %s10 = scalar_select 0, %s9, %s7
  $region1: #{tpu_custom_call.1} parent=0
    #allocation3 [shape = 'u8[8192]{0}', space=vmem, size = 0x2000, scoped, tag = 'output window, operand 0, single buffered']
    #allocation4 [shape = 's32[1]{0}', space=sflag, size = 0x4, scoped, tag = 'scoped memory for tpu_custom_call.1']
    %11 = vsyncpa [#allocation4], 0
    // Predicated region
    $region2: #{tpu_custom_call.1} parent=1 // pred_check
      _
    $region3: #{tpu_custom_call.1} parent=1 // pred_check_branch
      %13 = sbr.rel (0) target = $region5
    $region4: #{tpu_custom_call.1} parent=1 // pred_region
      _
    $region5: #{tpu_custom_call.1} parent=1 // pred_fallthru
      _
    // Predicated region
    $region6: #{tpu_custom_call.1} parent=1 // pred_check
      _
    $region7: #{tpu_custom_call.1} parent=1 // pred_check_branch
      %15 = sbr.rel (0) target = $region9
    $region8: #{tpu_custom_call.1} parent=1 // pred_region
      _
    $region9: #{tpu_custom_call.1} parent=1 // pred_fallthru
      _
    // Predicated region
    $region10: #{tpu_custom_call.1} parent=1 // pred_check
      _
    $region11: #{tpu_custom_call.1} parent=1 // pred_check_branch
      %17 = sbr.rel (0) target = $region13
    $region12: #{tpu_custom_call.1} parent=1 // pred_region
      _
    $region13: #{tpu_custom_call.1} parent=1 // pred_fallthru
      _
    // Predicated region
    $region14: #{tpu_custom_call.1} parent=1 // pred_check
      _
    $region15: #{tpu_custom_call.1} parent=1 // pred_check_branch
      %19 = sbr.rel (0) target = $region17
    $region16: #{tpu_custom_call.1} parent=1 // pred_region
      _
    $region17: #{tpu_custom_call.1} parent=1 // pred_fallthru
      _
    // Predicated region
    $region18: #{tpu_custom_call.1} parent=1 // pred_check
      _
    $region19: #{tpu_custom_call.1} parent=1 // pred_check_branch
      %21 = sbr.rel (0) target = $region21
    $region20: #{tpu_custom_call.1} parent=1 // pred_region
      _
    $region21: #{tpu_custom_call.1} parent=1 // pred_fallthru
      _
    // Predicated region
    $region22: #{tpu_custom_call.1} parent=1 // pred_check
      _
    $region23: #{tpu_custom_call.1} parent=1 // pred_check_branch
      %23 = sbr.rel (0) target = $region25
    $region24: #{tpu_custom_call.1} parent=1 // pred_region
      _
    $region25: #{tpu_custom_call.1} parent=1 // pred_fallthru
      _
    %p24 = scmp.eq.s32.totalorder 0, 0
    // Predicated region
    $region26: #{tpu_custom_call.1} parent=1 // pred_check
      %p25 = pneg %p24
    $region27: #{tpu_custom_call.1} parent=1 // pred_check_branch
      %27 = sbr.rel (%p25) target = $region29
    $region28: #{tpu_custom_call.1} parent=1 // pred_region
      %vm28 = vcmask 261120
      %29 = vst.msk [vmem:[#allocation2] sm:$0xff] %vm28, 0.0
      %30 = vst.msk [vmem:[#allocation2 + $0x8] sm:$0xff] %vm28, 0.0
    $region29: #{tpu_custom_call.1} parent=1 // pred_fallthru
      _
    %v31 = vld [vmem:[#allocation2] sm:$0xff]
    %v32 = vld [vmem:[#allocation2 + $0x8] sm:$0xff]
    %v33 = vld [vmem:[%s0] sm:$0xff]
    %v34 = vld [vmem:[%s0 + $0x8] sm:$0xff]
    %v35 = vld [vmem:[%s0 + $0x10] sm:$0xff]
    %v36 = vld [vmem:[%s0 + $0x18] sm:$0xff]
    %v37 = vld [vmem:[%s1] sm:$0xff]
    %v38 = vld [vmem:[%s1 + $0x8] sm:$0xff]
    %v39 = vld [vmem:[%s1 + $0x10] sm:$0xff]
    %v40 = vld [vmem:[%s1 + $0x18] sm:$0xff]
    %v41 = vld [vmem:[%s1 + $0x20] sm:$0xff]
    %v42 = vld [vmem:[%s1 + $0x28] sm:$0xff]
    %v43 = vld [vmem:[%s1 + $0x30] sm:$0xff]
    %v44 = vld [vmem:[%s1 + $0x38] sm:$0xff]
    %v45 = vld [vmem:[%s1 + $0x40] sm:$0xff]
    %v46 = vld [vmem:[%s1 + $0x48] sm:$0xff]
    %v47 = vld [vmem:[%s1 + $0x50] sm:$0xff]
    %v48 = vld [vmem:[%s1 + $0x58] sm:$0xff]
    %v49 = vld [vmem:[%s1 + $0x60] sm:$0xff]
    %v50 = vld [vmem:[%s1 + $0x68] sm:$0xff]
    %v51 = vld [vmem:[%s1 + $0x70] sm:$0xff]
    %v52 = vld [vmem:[%s1 + $0x78] sm:$0xff]
    %v53 = vld [vmem:[%s1 + $0x80] sm:$0xff]
    %v54 = vld [vmem:[%s1 + $0x88] sm:$0xff]
    %v55 = vld [vmem:[%s1 + $0x90] sm:$0xff]
    %v56 = vld [vmem:[%s1 + $0x98] sm:$0xff]
    %v57 = vld [vmem:[%s1 + $0xa0] sm:$0xff]
    %v58 = vld [vmem:[%s1 + $0xa8] sm:$0xff]
    %v59 = vld [vmem:[%s1 + $0xb0] sm:$0xff]
    %v60 = vld [vmem:[%s1 + $0xb8] sm:$0xff]
    %v61 = vld [vmem:[%s1 + $0xc0] sm:$0xff]
    %v62 = vld [vmem:[%s1 + $0xc8] sm:$0xff]
    %v63 = vld [vmem:[%s1 + $0xd0] sm:$0xff]
    %v64 = vld [vmem:[%s1 + $0xd8] sm:$0xff]
    %v65 = vld [vmem:[%s1 + $0xe0] sm:$0xff]
    %v66 = vld [vmem:[%s1 + $0xe8] sm:$0xff]
    %v67 = vld [vmem:[%s1 + $0xf0] sm:$0xff]
    %v68 = vld [vmem:[%s1 + $0xf8] sm:$0xff]
    %69 = vmatprep.subr.mxu0 0.0
    %70 = vmatpush1.msra.mxu0 %v37
    %71 = vmatprep.subr.mxu0 0.0
    %72 = vmatpush1.msra.mxu0 %v38
    %73 = vmatprep.subr.mxu0 0.0
    %74 = vmatpush1.msra.mxu0 %v39
    %75 = vmatprep.subr.mxu0 0.0
    %76 = vmatpush1.msra.mxu0 %v40
    %77 = vmatprep.subr.mxu0 0.0
    %78 = vmatpush1.msra.mxu0 %v41
    %79 = vmatprep.subr.mxu0 0.0
    %80 = vmatpush1.msra.mxu0 %v42
    %81 = vmatprep.subr.mxu0 0.0
    %82 = vmatpush1.msra.mxu0 %v43
    %83 = vmatprep.subr.mxu0 0.0
    %84 = vmatpush1.msra.mxu0 %v44
    %85 = vmatprep.subr.mxu0 0.0
    %86 = vmatpush1.msra.mxu0 %v45
    %87 = vmatprep.subr.mxu0 0.0
    %88 = vmatpush1.msra.mxu0 %v46
    %89 = vmatprep.subr.mxu0 0.0
    %90 = vmatpush1.msra.mxu0 %v47
    %91 = vmatprep.subr.mxu0 0.0
    %92 = vmatpush1.msra.mxu0 %v48
    %93 = vmatprep.subr.mxu0 0.0
    %94 = vmatpush1.msra.mxu0 %v49
    %95 = vmatprep.subr.mxu0 0.0
    %96 = vmatpush1.msra.mxu0 %v50
    %97 = vmatprep.subr.mxu0 0.0
    %98 = vmatpush1.msra.mxu0 %v51
    %99 = vmatprep.subr.mxu0 0.0
    %100 = vmatpush1.msra.mxu0 %v52
    %101 = vmatprep.subr.mxu0 0.0
    %102 = vmatpush1.msra.mxu0 %v53
    %103 = vmatprep.subr.mxu0 0.0
    %104 = vmatpush1.msra.mxu0 %v54
    %105 = vmatprep.subr.mxu0 0.0
    %106 = vmatpush1.msra.mxu0 %v55
    %107 = vmatprep.subr.mxu0 0.0
    %108 = vmatpush1.msra.mxu0 %v56
    %109 = vmatprep.subr.mxu0 0.0
    %110 = vmatpush1.msra.mxu0 %v57
    %111 = vmatprep.subr.mxu0 0.0
    %112 = vmatpush1.msra.mxu0 %v58
    %113 = vmatprep.subr.mxu0 0.0
    %114 = vmatpush1.msra.mxu0 %v59
    %115 = vmatprep.subr.mxu0 0.0
    %116 = vmatpush1.msra.mxu0 %v60
    %117 = vmatprep.subr.mxu0 0.0
    %118 = vmatpush1.msra.mxu0 %v61
    %119 = vmatprep.subr.mxu0 0.0
    %120 = vmatpush1.msra.mxu0 %v62
    %121 = vmatprep.subr.mxu0 0.0
    %122 = vmatpush1.msra.mxu0 %v63
    %123 = vmatprep.subr.mxu0 0.0
    %124 = vmatpush1.msra.mxu0 %v64
    %125 = vmatprep.subr.mxu0 0.0
    %126 = vmatpush1.msra.mxu0 %v65
    %127 = vmatprep.subr.mxu0 0.0
    %128 = vmatpush1.msra.mxu0 %v66
    %129 = vmatprep.subr.mxu0 0.0
    %130 = vmatpush1.msra.mxu0 %v67
    %131 = vmatprep.subr.mxu0 0.0
    %132 = vmatpush1.msra.mxu0 %v68
    %133 = vmatprep.mubr.f32.mxu0 %v34
    %134 = vmatmul.mubr.f32.gmra.mrb[0].mxu0 %v33
    %v135 = vpop.f32.mrb[0].mxu0
    %v136 = vadd.f32 0.0, %v135
    %v137 = vpop.f32.mrb[0].mxu0
    %138 = vmatprep.mubr.f32.mxu0 %v36
    %139 = vmatmul.mubr.f32.gmra.mrb[0].mxu0 %v35
    %v140 = vpop.f32.mrb[0].mxu0
    %v141 = vadd.f32 0.0, %v140
    %v142 = vpop.f32.mrb[0].mxu0
    %143 = vdwg.mxu0
    %v144 = vadd.f32 %v31, %v136
    %v145 = vadd.f32 %v32, %v141
    %vm146 = vcmask 261120
    %147 = vst.msk [vmem:[#allocation2] sm:$0xff] %vm146, %v144
    %148 = vst.msk [vmem:[#allocation2 + $0x8] sm:$0xff] %vm146, %v145
    // Predicated region
    $region30: #{tpu_custom_call.1} parent=1 // pred_check
      %p149 = pneg %p24
    $region31: #{tpu_custom_call.1} parent=1 // pred_check_branch
      %151 = sbr.rel (%p149) target = $region33
    $region32: #{tpu_custom_call.1} parent=1 // pred_region
      %v152 = vld [vmem:[#allocation2] sm:$0xff]
      %v153 = vld [vmem:[#allocation2 + $0x8] sm:$0xff]
      %v154 = vld [vmem:[%s2] sm:$0x1]
      %v156 = vlaneseq
      %v157 = vshrl.u32 %v156, 7
      %v158 = vsub.s32 0, %v157
      %v159 = vrot.slane %v154, %v158
      %v161 = vadd.f32 %v152, %v159
      %v162 = vadd.f32 %v153, %v159
      %vm163 = vcmp.ge.f32.partialorder %v161, 0.0
      %vm164 = vcmp.ge.f32.partialorder %v162, 0.0
      %v165 = vmul.f32 %v161, 0.01
      %v166 = vmul.f32 %v162, 0.01
      %v167 = vsel %vm163, %v161, %v165
      %v168 = vsel %vm164, %v162, %v166
      %v169 = vld [vmem:[%s3] sm:$0xff]
      %v170 = vld [vmem:[%s3 + $0x8] sm:$0xff]
      %v171 = vld [vmem:[%s3 + $0x10] sm:$0xff]
      %v172 = vld [vmem:[%s3 + $0x18] sm:$0xff]
      %v173 = vld [vmem:[%s4] sm:$0x1]
      %v175 = vlaneseq
      %v176 = vshrl.u32 %v175, 7
      %v177 = vsub.s32 0, %v176
      %v178 = vrot.slane %v173, %v177
      %v181 = vsel %vm146, %v167, 0
      %v184 = vsel %vm146, %v168, 0
      %186 = vmatprep.subr.mxu0 0.0
      %187 = vmatpush1.msra.mxu0 %v169
      %188 = vmatprep.subr.mxu0 0.0
      %189 = vmatpush1.msra.mxu0 %v170
      %190 = vmatprep.subr.mxu0 0.0
      %191 = vmatpush1.msra.mxu0 %v171
      %192 = vmatprep.subr.mxu0 0.0
      %193 = vmatpush1.msra.mxu0 %v172
      %194 = vmatprep.subr.mxu0 0.0
      %195 = vmatpush1.msra.mxu0 0.0
      %196 = vmatprep.subr.mxu0 0.0
      %197 = vmatpush1.msra.mxu0 0.0
      %198 = vmatprep.subr.mxu0 0.0
      %199 = vmatpush1.msra.mxu0 0.0
      %200 = vmatprep.subr.mxu0 0.0
      %201 = vmatpush1.msra.mxu0 0.0
      %202 = vmatprep.subr.mxu0 0.0
      %203 = vmatpush1.msra.mxu0 0.0
      %204 = vmatprep.subr.mxu0 0.0
      %205 = vmatpush1.msra.mxu0 0.0
      %206 = vmatprep.subr.mxu0 0.0
      %207 = vmatpush1.msra.mxu0 0.0
      %208 = vmatprep.subr.mxu0 0.0
      %209 = vmatpush1.msra.mxu0 0.0
      %210 = vmatprep.subr.mxu0 0.0
      %211 = vmatpush1.msra.mxu0 0.0
      %212 = vmatprep.subr.mxu0 0.0
      %213 = vmatpush1.msra.mxu0 0.0
      %214 = vmatprep.subr.mxu0 0.0
      %215 = vmatpush1.msra.mxu0 0.0
      %216 = vmatprep.subr.mxu0 0.0
      %217 = vmatpush1.msra.mxu0 0.0
      %218 = vmatprep.subr.mxu0 0.0
      %219 = vmatpush1.msra.mxu0 0.0
      %220 = vmatprep.subr.mxu0 0.0
      %221 = vmatpush1.msra.mxu0 0.0
      %222 = vmatprep.subr.mxu0 0.0
      %223 = vmatpush1.msra.mxu0 0.0
      %224 = vmatprep.subr.mxu0 0.0
      %225 = vmatpush1.msra.mxu0 0.0
      %226 = vmatprep.subr.mxu0 0.0
      %227 = vmatpush1.msra.mxu0 0.0
      %228 = vmatprep.subr.mxu0 0.0
      %229 = vmatpush1.msra.mxu0 0.0
      %230 = vmatprep.subr.mxu0 0.0
      %231 = vmatpush1.msra.mxu0 0.0
      %232 = vmatprep.subr.mxu0 0.0
      %233 = vmatpush1.msra.mxu0 0.0
      %234 = vmatprep.subr.mxu0 0.0
      %235 = vmatpush1.msra.mxu0 0.0
      %236 = vmatprep.subr.mxu0 0.0
      %237 = vmatpush1.msra.mxu0 0.0
      %238 = vmatprep.subr.mxu0 0.0
      %239 = vmatpush1.msra.mxu0 0.0
      %240 = vmatprep.subr.mxu0 0.0
      %241 = vmatpush1.msra.mxu0 0.0
      %242 = vmatprep.subr.mxu0 0.0
      %243 = vmatpush1.msra.mxu0 0.0
      %244 = vmatprep.subr.mxu0 0.0
      %245 = vmatpush1.msra.mxu0 0.0
      %246 = vmatprep.subr.mxu0 0.0
      %247 = vmatpush1.msra.mxu0 0.0
      %248 = vmatprep.subr.mxu0 0.0
      %249 = vmatpush1.msra.mxu0 0.0
      %250 = vmatprep.mubr.f32.mxu0 0.0
      %251 = vmatmul.mubr.f32.gmra.mrb[0].mxu0 %v181
      %v252 = vpop.f32.mrb[0].mxu0
      %v253 = vadd.f32 %v178, %v252
      %v254 = vpop.f32.mrb[0].mxu0
      %255 = vmatprep.mubr.f32.mxu0 0.0
      %256 = vmatmul.mubr.f32.gmra.mrb[0].mxu0 %v184
      %v257 = vpop.f32.mrb[0].mxu0
      %v258 = vadd.f32 %v178, %v257
      %v259 = vpop.f32.mrb[0].mxu0
      %260 = vdwg.mxu0
      %v261 = vadd.f32 %v253, 1.0
      %v262 = vadd.f32 %v258, 1.0
      %v263 = vmul.f32 %v253, %v253
      %v264 = vmul.f32 %v258, %v258
      %267 = vrot.lane.b32.xlu0 %v263, 16
      %v268 = vpop.permute.xlu0 %267
      %269 = vrot.lane.b32.xlu0 %v264, 16
      %v270 = vpop.permute.xlu0 %269
      %v273 = vsub.f32 %v261, %v268
      %v274 = vsub.f32 %v262, %v270
      %v275 = vmul.f32 %v253, 1.442695
      %v276 = vpow.pop %v275
      %v277 = vmul.f32 %v258, 1.442695
      %v278 = vpow.pop %v277
      %v279 = vsub.f32 %v273, %v276
      %v280 = vsub.f32 %v274, %v278
      %283 = vrot.lane.b32.xlu0 %v279, 112
      %v284 = vpop.permute.xlu0 %283
      %285 = vrot.lane.b32.xlu0 %v280, 112
      %v286 = vpop.permute.xlu0 %285
      %vm289 = vcmask 130048
      %v290 = vsel %vm289, %v284, 0.0
      %291 = vadd.xlane.f32.xlu0 %v290
      %v292 = vpop.xlane.xlu0 %291
      %v293 = vsel %vm289, %v286, 0.0
      %294 = vadd.xlane.f32.xlu0 %v293
      %v295 = vpop.xlane.xlu0 %294
      %v296 = vmul.f32 %v292, -0.5
      %v297 = vmul.f32 %v295, -0.5
      %v298 = vld [vmem:[%s5] sm:$0xff]
      %v299 = vld [vmem:[%s5 + $0x8] sm:$0xff]
      %v300 = vmul.f32 %v253, 0.5
      %v301 = vmul.f32 %v258, 0.5
      %v302 = vmul.f32 %v300, 1.442695
      %v303 = vpow.pop %v302
      %v304 = vmul.f32 %v301, 1.442695
      %v305 = vpow.pop %v304
      %308 = vrot.lane.b32.xlu0 %v303, 112
      %v309 = vpop.permute.xlu0 %308
      %310 = vrot.lane.b32.xlu0 %v305, 112
      %v311 = vpop.permute.xlu0 %310
      %v314 = vmul.f32 %v298, %v309
      %v315 = vmul.f32 %v299, %v311
      %v316 = vadd.f32 %v314, %v253
      %v317 = vadd.f32 %v315, %v258
      %v318 = vsel %vm289, %v316, -inf
      %319 = vmax.xlane.f32.xlu0 %v318
      %v320 = vpop.xlane.xlu0 %319
      %v321 = vsel %vm289, %v317, -inf
      %322 = vmax.xlane.f32.xlu0 %v321
      %v323 = vpop.xlane.xlu0 %322
      %v324 = vsub.f32 %v316, %v320
      %v325 = vsub.f32 %v317, %v323
      %v326 = vmul.f32 %v324, 1.442695
      %v327 = vpow.pop %v326
      %v328 = vmul.f32 %v325, 1.442695
      %v329 = vpow.pop %v328
      %v330 = vsel %vm289, %v327, 0.0
      %331 = vadd.xlane.f32.xlu0 %v330
      %v332 = vpop.xlane.xlu0 %331
      %v333 = vsel %vm289, %v329, 0.0
      %334 = vadd.xlane.f32.xlu0 %v333
      %v335 = vpop.xlane.xlu0 %334
      %v336 = vrcp.pop %v332
      %v337 = vmul.f32 %v327, %v336
      %v338 = vrcp.pop %v335
      %v339 = vmul.f32 %v329, %v338
      %340 = vst [vmem:[#allocation3] sm:$0xff] 0.0
      %341 = vst [vmem:[#allocation3 + $0x8] sm:$0xff] 0.0
      %342 = vst.msk [vmem:[#allocation3] sm:$0xff] %vm289, %v337
      %343 = vst.msk [vmem:[#allocation3 + $0x8] sm:$0xff] %vm289, %v339
      %vm344 = vcmask 138368
      %345 = vst.msk [vmem:[#allocation3] sm:$0xff] %vm344, %v296
      %346 = vst.msk [vmem:[#allocation3 + $0x8] sm:$0xff] %vm344, %v297
    $region33: #{tpu_custom_call.1} parent=1 // pred_fallthru
      _
    // Predicated region
    $region34: #{tpu_custom_call.1} parent=1 // pred_check
      _
    $region35: #{tpu_custom_call.1} parent=1 // pred_check_branch
      %348 = sbr.rel (0) target = $region37
    $region36: #{tpu_custom_call.1} parent=1 // pred_region
      %s350 = ssub.s32 256, 256
      %351 = vsyncadd [#allocation4], %s350
      %s352 = sshll.u32 [#allocation3], 4
      %s353 = int_to_ptr.vmem [resolvable:$true] %s352
      %358 = dma.vmem_to_hbm [thread:$0]  %s353, 256, %s6, [#allocation4], 128, 128, 8
    $region37: #{tpu_custom_call.1} parent=1 // pred_fallthru
      _
    // Predicated region
    $region38: #{tpu_custom_call.1} parent=1 // pred_check
      _
    $region39: #{tpu_custom_call.1} parent=1 // pred_check_branch
      %360 = sbr.rel (0) target = $region41
    $region40: #{tpu_custom_call.1} parent=1 // pred_region
      %361 = dma.done [#allocation4], 256
    $region41: #{tpu_custom_call.1} parent=1 // pred_fallthru
      _
    %362 = vsyncpa [#allocation4], 1

</llo_original>
